<compile_context>
chip_gen: v7x
topology: tpu7x:2x2x1
jax: 0.10.0
libtpu: 0.0.40
codegen_flags: <defaults>
</compile_context>

<pallas_src>
import math

import jax
import jax.numpy as jnp
from jax.experimental import pallas as pl
from jax.experimental.pallas import tpu as pltpu


def _mygate_kernel(g_ref, x_ref, o_ref):
    # y = gate * x ; gate is a (1, TF) row broadcast over the (TB, TF) tile.
    o_ref[...] = (x_ref[...] * g_ref[...]).astype(o_ref.dtype)


def _run_gated_2d(x2, gate_row, *, target_tile_bytes, donate_x):
    """x2: (B_eff, F_eff) with F_eff % 128 == 0 (lane-dense). gate_row: (1, F_eff)."""
    B_eff, F_eff = x2.shape
    itemsize = jnp.dtype(x2.dtype).itemsize
    # Sublane packing multiple: 8 for f32, 16 for bf16, 32 for int8/fp8.
    sub = max(8, 32 // itemsize)

    # ---- feature tiling: largest TF = g*128 that divides F_eff and fits the budget
    # even at the minimum (sub-row) batch tile.
    n_lane_blocks = F_eff // 128
    max_g = max(1, target_tile_bytes // (sub * 128 * itemsize))
    g = 1
    for cand in range(min(n_lane_blocks, max_g), 0, -1):
        if n_lane_blocks % cand == 0:
            g = cand
            break
    TF = g * 128
    n_feat_tiles = F_eff // TF

    # ---- batch tiling: ~target_tile_bytes per (TB, TF) input tile.
    TB = max(sub, (target_tile_bytes // (TF * itemsize)) // sub * sub)
    if TB >= B_eff:
        if n_feat_tiles == 1 and B_eff >= 2 * sub:
            # Whole array would be a single grid step: split the batch so both
            # TensorCores get work on v7x (neutral on v5e/v6e).
            TB = ((pl.cdiv(B_eff, 2) + sub - 1) // sub) * sub
        else:
            TB = B_eff  # full extent (allowed even if not a multiple of sub)

    grid = (pl.cdiv(B_eff, TB), n_feat_tiles)

    # Explicit scoped-VMEM limit: 2 buffers x (x tile + out tile) + gate + margin.
    tile_bytes = min(TB, B_eff) * TF * itemsize
    vmem_limit = int(min(48 << 20, 4 * tile_bytes + (8 << 20)))

    kwargs = {}
    if donate_x:
        kwargs["input_output_aliases"] = {1: 0}  # x2 -> out (in-place write-back)

    return pl.pallas_call(
        _mygate_kernel,
        out_shape=jax.ShapeDtypeStruct((B_eff, F_eff), x2.dtype),
        grid_spec=pltpu.PrefetchScalarGridSpec(
            num_scalar_prefetch=0,
            grid=grid,
            in_specs=[
                pl.BlockSpec((1, TF), lambda i, j: (0, j)),    # gate row (per feature tile)
                pl.BlockSpec((TB, TF), lambda i, j: (i, j)),   # input tile
            ],
            out_specs=pl.BlockSpec((TB, TF), lambda i, j: (i, j)),
        ),
        compiler_params=pltpu.CompilerParams(
            dimension_semantics=("parallel", "parallel"),  # independent tiles -> megacore
            vmem_limit_bytes=vmem_limit,
        ),
        **kwargs,
    )(gate_row, x2)


def mygate_forward(x, weight, mask, *, use_tanh=True,
                   target_tile_bytes=4 * 1024 * 1024, donate_x=False):
    """x: (..., F), weight/mask: (F,). Returns mask * gate_fn(weight) * x."""
    orig_shape = x.shape
    F = orig_shape[-1]
    x2 = x.reshape(-1, F)
    B = x2.shape[0]

    # Precompute the gate once (f32 math for the transcendental, then cast to x.dtype).
    gate_fn = jnp.tanh if use_tanh else jax.nn.sigmoid
    gate_f32 = (mask.reshape(-1).astype(jnp.float32)
                * gate_fn(weight.reshape(-1).astype(jnp.float32)))
    gate = gate_f32.astype(x.dtype)  # (F,)

    if F % 128 == 0:
        out2 = _run_gated_2d(x2, gate.reshape(1, F),
                             target_tile_bytes=target_tile_bytes, donate_x=donate_x)
        return out2.reshape(orig_shape)

    # F not lane-dense: fold k rows into the lane axis so stores are full 128-lane vst's.
    k = math.lcm(F, 128) // F
    B_main = (B // k) * k
    parts = []
    if B_main > 0:
        F_eff = F * k
        x_main = x2[:B_main].reshape(B_main // k, F_eff)
        gate_row = jnp.tile(gate, (k,)).reshape(1, F_eff)
        out_main = _run_gated_2d(x_main, gate_row,
                                 target_tile_bytes=target_tile_bytes,
                                 donate_x=donate_x)
        parts.append(out_main.reshape(B_main, F))
    if B_main < B:
        # Leftover (< k rows): tiny, handled with plain jnp to keep the kernel's
        # stores unmasked for the bulk of the data.
        parts.append((x2[B_main:] * gate).astype(x.dtype))
    out2 = parts[0] if len(parts) == 1 else jnp.concatenate(parts, axis=0)
    return out2.reshape(orig_shape)


if __name__ == "__main__":
    key = jax.random.PRNGKey(0)
    # Small (..., F) input consistent with the module: gate broadcasts on the last axis.
    B, S, F = 2, 8, 32
    x = jax.random.normal(key, (B, S, F), dtype=jnp.float32)

    # Deterministic parameter init matching MyGate.__init__ / reset_parameters():
    #   weight = 10.0 everywhere, mask = ones
    weight = jnp.full((F,), 10.0, dtype=jnp.float32)
    mask = jnp.ones((F,), dtype=jnp.float32)

    # tanh path (module default)
    out = jax.block_until_ready(mygate_forward(x, weight, mask, use_tanh=True))
    ref = mask * jnp.tanh(weight) * x
    assert out.shape == x.shape
    assert jnp.allclose(out, ref, atol=1e-6, rtol=1e-6)

    # sigmoid path
    out_sig = jax.block_until_ready(mygate_forward(x, weight, mask, use_tanh=False))
    ref_sig = mask * jax.nn.sigmoid(weight) * x
    assert jnp.allclose(out_sig, ref_sig, atol=1e-6, rtol=1e-6)

    # Exercise the fold-fallback path: row count (5) not divisible by k = 128/gcd(32,128) = 4,
    # so the bulk (4 rows) goes through the folded kernel and 1 row through plain jnp.
    x_odd = jax.random.normal(jax.random.PRNGKey(1), (5, F), dtype=jnp.float32)
    out_odd = jax.block_until_ready(mygate_forward(x_odd, weight, mask, use_tanh=True))
    assert jnp.allclose(out_odd, mask * jnp.tanh(weight) * x_odd, atol=1e-6, rtol=1e-6)

    print("KERNEL_OK")
</pallas_src>

<mosaic_0001>
module attributes {stable_mosaic.version = 11 : i64} {
  func.func @_mygate_kernel(%arg0: i32, %arg1: i32, %arg2: memref<1x128xf32, #tpu.memory_space<vmem>>, %arg3: memref<4x128xf32, #tpu.memory_space<vmem>>, %arg4: memref<4x128xf32, #tpu.memory_space<vmem>>) attributes {dimension_semantics = [#tpu.dimension_semantics<parallel>, #tpu.dimension_semantics<parallel>], iteration_bounds = array<i64: 1, 1>, scalar_prefetch = 0 : i64, scratch_operands = 0 : i64, tpu.core_type = #tpu.core_type<tc>, window_params = [{transform_indices = @transform_0, window_bounds = array<i64: 1, 128>}, {transform_indices = @transform_1, window_bounds = array<i64: 4, 128>}, {transform_indices = @transform_2, window_bounds = array<i64: 4, 128>}]} {
    %c0 = arith.constant 0 : index
    %c0_0 = arith.constant 0 : index
    %0 = vector.load %arg3[%c0, %c0_0] : memref<4x128xf32, #tpu.memory_space<vmem>>, vector<4x128xf32>
    %c0_1 = arith.constant 0 : index
    %c0_2 = arith.constant 0 : index
    %1 = vector.load %arg2[%c0_1, %c0_2] : memref<1x128xf32, #tpu.memory_space<vmem>>, vector<1x128xf32>
    %2 = vector.broadcast %1 : vector<1x128xf32> to vector<4x128xf32>
    %3 = arith.mulf %0, %2 : vector<4x128xf32>
    %c0_3 = arith.constant 0 : index
    %c0_4 = arith.constant 0 : index
    %4 = vector.load %arg4[%c0_3, %c0_4] : memref<4x128xf32, #tpu.memory_space<vmem>>, vector<4x128xf32>
    tpu.vector_store %arg4[%c0_3, %c0_4], %3 {strides = array<i32>} : memref<4x128xf32, #tpu.memory_space<vmem>>, vector<4x128xf32>,
    return
  }
  func.func @transform_0(%arg0: i32, %arg1: i32) -> (i32, i32) {
    %c0_i32 = arith.constant 0 : i32
    %c0_i32_0 = arith.constant 0 : i32
    return %c0_i32, %arg1 : i32, i32
  }
  func.func @transform_1(%arg0: i32, %arg1: i32) -> (i32, i32) {
    %c0_i32 = arith.constant 0 : i32
    return %arg0, %arg1 : i32, i32
  }
  func.func @transform_2(%arg0: i32, %arg1: i32) -> (i32, i32) {
    %c0_i32 = arith.constant 0 : i32
    return %arg0, %arg1 : i32, i32
  }
}

</mosaic_0001>

<llo_original>
// kernel: tpu_custom_call.1
$region0: #{tpu_custom_call.1}
  #allocation0 [shape = 'u32[]', space=smem, size = 0x4, offset = 0x4, fixed_abs, tag = 'smem constant byte address 0x4 - core index']
  #allocation1 [shape = 'u32[144,128]{1,0:T(1,128)}', space=vmem, size = 0x12000, scoped, tag = 'internal scratch']
  %s0 = inlined_call_operand.hbm [shape: f32[1,128], index: 0, kind: input, shape index: {}]
  %s1 = inlined_call_operand.hbm [shape: f32[4,128], index: 1, kind: input, shape index: {}]
  %s2 = inlined_call_operand.hbm [shape: f32[4,128], index: 2, kind: output, shape index: {}]
  %s3 = sld [smem:[#allocation0]]
  $region26: #{tpu_custom_call.1} parent=0
    _
  %s5 = ssub.s32 1, %s3
  %s6 = scalar_select 0, %s5, %s3
  $region1: #{tpu_custom_call.1} parent=0
    #allocation2 [shape = 'u8[512]{0}', space=vmem, size = 0x400, scoped, tag = 'input window, operand 0, single buffered']
    #allocation3 [shape = 's32[1]{0}', space=sflag, size = 0x4, scoped, tag = 'scoped memory for tpu_custom_call.1']
    #allocation4 [shape = 's32[1]{0}', space=sflag, size = 0x4, scoped, tag = 'scoped memory for tpu_custom_call.1']
    #allocation5 [shape = 'u8[2048]{0}', space=vmem, size = 0x800, scoped, tag = 'input window, operand 1, single buffered']
    #allocation6 [shape = 's32[1]{0}', space=sflag, size = 0x4, scoped, tag = 'scoped memory for tpu_custom_call.1']
    #allocation7 [shape = 'u8[2048]{0}', space=vmem, size = 0x800, scoped, tag = 'output window, operand 0, single buffered']
    %7 = vsyncpa [#allocation3], 0
    %8 = vsyncpa [#allocation6], 0
    %9 = vsyncpa [#allocation4], 0
    // Predicated region
    $region2: #{tpu_custom_call.1} parent=1 // pred_check
      _
    $region3: #{tpu_custom_call.1} parent=1 // pred_check_branch
      %11 = sbr.rel (0) target = $region5
    $region4: #{tpu_custom_call.1} parent=1 // pred_region
      %s13 = ssub.s32 16, 16
      %14 = vsyncadd [#allocation3], %s13
      %s16 = sshll.u32 [#allocation2], 4
      %s17 = int_to_ptr.vmem [resolvable:$true] %s16
      %19 = dma.hbm_to_vmem [thread:$0]  %s0, 16, %s17, [#allocation3]
    $region5: #{tpu_custom_call.1} parent=1 // pred_fallthru
      _
    // Predicated region
    $region6: #{tpu_custom_call.1} parent=1 // pred_check
      _
    $region7: #{tpu_custom_call.1} parent=1 // pred_check_branch
      %21 = sbr.rel (0) target = $region9
    $region8: #{tpu_custom_call.1} parent=1 // pred_region
      %s23 = ssub.s32 64, 64
      %24 = vsyncadd [#allocation6], %s23
      %s26 = sshll.u32 [#allocation5], 4
      %s27 = int_to_ptr.vmem [resolvable:$true] %s26
      %29 = dma.hbm_to_vmem [thread:$0]  %s1, 64, %s27, [#allocation6]
    $region9: #{tpu_custom_call.1} parent=1 // pred_fallthru
      _
    // Predicated region
    $region10: #{tpu_custom_call.1} parent=1 // pred_check
      _
    $region11: #{tpu_custom_call.1} parent=1 // pred_check_branch
      %31 = sbr.rel (0) target = $region13
    $region12: #{tpu_custom_call.1} parent=1 // pred_region
      %32 = dma.done [#allocation3], 16
    $region13: #{tpu_custom_call.1} parent=1 // pred_fallthru
      _
    // Predicated region
    $region14: #{tpu_custom_call.1} parent=1 // pred_check
      _
    $region15: #{tpu_custom_call.1} parent=1 // pred_check_branch
      %34 = sbr.rel (0) target = $region17
    $region16: #{tpu_custom_call.1} parent=1 // pred_region
      %35 = dma.done [#allocation6], 64
    $region17: #{tpu_custom_call.1} parent=1 // pred_fallthru
      _
    %v36 = vld [vmem:[#allocation5] sm:$0xf]
    %v37 = vld [vmem:[#allocation2] sm:$0x1]
    %v39 = vlaneseq
    %v40 = vshrl.u32 %v39, 7
    %v41 = vsub.s32 0, %v40
    %v42 = vrot.slane %v37, %v41
    %v44 = vmul.f32 %v36, %v42
    %45 = vst [vmem:[#allocation7] sm:$0xf] %v44
    // Predicated region
    $region18: #{tpu_custom_call.1} parent=1 // pred_check
      _
    $region19: #{tpu_custom_call.1} parent=1 // pred_check_branch
      %47 = sbr.rel (0) target = $region21
    $region20: #{tpu_custom_call.1} parent=1 // pred_region
      %s49 = ssub.s32 64, 64
      %50 = vsyncadd [#allocation4], %s49
      %s52 = sshll.u32 [#allocation7], 4
      %s53 = int_to_ptr.vmem [resolvable:$true] %s52
      %55 = dma.vmem_to_hbm [thread:$0]  %s53, 64, %s2, [#allocation4]
    $region21: #{tpu_custom_call.1} parent=1 // pred_fallthru
      _
    // Predicated region
    $region22: #{tpu_custom_call.1} parent=1 // pred_check
      _
    $region23: #{tpu_custom_call.1} parent=1 // pred_check_branch
      %57 = sbr.rel (0) target = $region25
    $region24: #{tpu_custom_call.1} parent=1 // pred_region
      %58 = dma.done [#allocation4], 64
    $region25: #{tpu_custom_call.1} parent=1 // pred_fallthru
      _
    %59 = vsyncpa [#allocation3], 1
    %60 = vsyncpa [#allocation6], 1
    %61 = vsyncpa [#allocation4], 1

</llo_original>
